<compile_context>
chip_gen: v7x
topology: tpu7x:2x2x1
jax: 0.10.0
libtpu: 0.0.40
codegen_flags: <defaults>
</compile_context>

<pallas_src>
from functools import partial

import jax
import jax.numpy as jnp
from jax.experimental import pallas as pl
from jax.experimental.pallas import tpu as pltpu

PAD = 128       # lane-dense padded feature width for every layer
SUB = 128       # in-kernel row sub-tile
MAX_SUB_TILES = 4   # at most 4 * 128 = 512 rows per grid step


def _round_up(x, m):
    return ((x + m - 1) // m) * m


def _choose_tile(batch):
    """Pick (tm, sub) so tm | padded rows, tm % 8 == 0, grid has >=2 steps when possible."""
    rows8 = _round_up(batch, 8)
    if rows8 <= SUB:
        return rows8, rows8                     # single sub-tile, grid = (1,)
    n128 = (rows8 + SUB - 1) // SUB             # number of 128-row sub-tiles total
    per_step = min(MAX_SUB_TILES, max(1, n128 // 2))   # leave >=2 grid steps (v7x)
    return per_step * SUB, SUB


def _make_ffnet_kernel(in_dims, tm, sub):
    n_sub = tm // sub

    def kernel(x_ref, w_ref, b_ref, o_ref, act_a, act_b):
        # x_ref: (tm, in_dims) bf16    w_ref: (4, 128, 128) bf16 (VMEM-resident)
        # b_ref: (4, 1, 128) f32       o_ref: (tm, 128) f32
        # act_a/act_b: (tm, 128) bf16 ping-pong activation scratches.
        #
        # Stage the unpadded input into a lane-dense 128-wide scratch; dead
        # lanes/rows stay zero, so matmul+bias+ReLU on them is harmless garbage
        # that the wrapper slices off.
        act_a[...] = jnp.zeros_like(act_a)
        act_a[:, :in_dims] = x_ref[...]

        bufs = (act_a, act_b)
        for li in range(4):                      # layer-outer
            src = bufs[li % 2]
            dst = bufs[(li + 1) % 2]
            w_l = w_ref[li]                      # (128, 128) bf16, hoisted per layer
            b_l = b_ref[li]                      # (1, 128) f32
            for s in range(n_sub):               # row-subtile-inner (independent chunks)
                r0 = s * sub
                z = jnp.dot(src[r0:r0 + sub, :], w_l,
                            preferred_element_type=jnp.float32)
                h = jnp.maximum(z + b_l, 0.0)    # f32 epilogue (v5e-safe)
                if li == 3:
                    o_ref[r0:r0 + sub, :] = h            # full 128-lane f32 store
                else:
                    dst[r0:r0 + sub, :] = h.astype(jnp.bfloat16)

    return kernel


def prepare_ffnet_params(params):
    """One-time per parameter set: stack + zero-pad weights/biases to 128 lanes."""
    w_stack = jnp.zeros((4, PAD, PAD), jnp.bfloat16)
    b_stack = jnp.zeros((4, 1, PAD), jnp.float32)
    for li in range(4):
        w = params[f"w{li + 1}"]
        b = params[f"b{li + 1}"]
        w_stack = w_stack.at[li, :w.shape[0], :w.shape[1]].set(
            w.astype(jnp.bfloat16))
        b_stack = b_stack.at[li, :, :b.shape[1]].set(b)
    out_dims = params["w4"].shape[1]
    return w_stack, b_stack, out_dims


@partial(jax.jit, static_argnames=("out_dims",))
def ffnet_forward(x, w_stack, b_stack, *, out_dims):
    """x: (B, input_dims) f32; w_stack/b_stack from prepare_ffnet_params."""
    B, in_dims = x.shape
    tm, sub = _choose_tile(B)
    b_pad = _round_up(B, tm)

    xb = x.astype(jnp.bfloat16)                  # bf16 activations into the kernel
    if b_pad != B:                               # row pad only (lanes padded in-kernel)
        xb = jnp.zeros((b_pad, in_dims), jnp.bfloat16).at[:B].set(xb)

    out = pl.pallas_call(
        _make_ffnet_kernel(in_dims, tm, sub),
        out_shape=jax.ShapeDtypeStruct((b_pad, PAD), jnp.float32),
        grid=(b_pad // tm,),
        in_specs=[
            pl.BlockSpec((tm, in_dims), lambda i: (i, 0)),     # x: per-tile, unpadded lanes
            pl.BlockSpec((4, PAD, PAD), lambda i: (0, 0, 0)),  # weights: VMEM-resident
            pl.BlockSpec((4, 1, PAD), lambda i: (0, 0, 0)),    # biases: VMEM-resident
        ],
        out_specs=pl.BlockSpec((tm, PAD), lambda i: (i, 0)),
        scratch_shapes=[
            pltpu.VMEM((tm, PAD), jnp.bfloat16),               # activation ping
            pltpu.VMEM((tm, PAD), jnp.bfloat16),               # activation pong
        ],
        compiler_params=pltpu.CompilerParams(
            dimension_semantics=("parallel",)),
    )(xb, w_stack, b_stack)

    return out[:B, :out_dims]


def init_ffnet_params(key, input_dims, fc1_dims, fc2_dims, fc3_dims, out_dims):
    """Deterministic synthetic init (PyTorch-Linear-like uniform fan-in scaling)."""
    dims = [input_dims, fc1_dims, fc2_dims, fc3_dims, out_dims]
    params = {}
    for li in range(4):
        key, kw, kb = jax.random.split(key, 3)
        fan_in, fan_out = dims[li], dims[li + 1]
        bound = 1.0 / jnp.sqrt(jnp.float32(fan_in))
        # Stored as (in, out) == transpose of torch's (out, in) weight layout.
        params[f"w{li + 1}"] = jax.random.uniform(
            kw, (fan_in, fan_out), jnp.float32, -bound, bound)
        params[f"b{li + 1}"] = jax.random.uniform(
            kb, (1, fan_out), jnp.float32, -bound, bound)
    return params


def ffnet_reference_f32(x, params):
    h = x
    for li in range(1, 5):
        h = jnp.maximum(h @ params[f"w{li}"] + params[f"b{li}"], 0.0)
    return h


def ffnet_reference_bf16(x, params):
    # Matches the kernel's dtype pipeline: bf16 MXU inputs, f32 accumulation,
    # f32 bias + ReLU, bf16 activation handoff between layers.
    h = x.astype(jnp.bfloat16)
    for li in range(1, 5):
        z = jnp.dot(h, params[f"w{li}"].astype(jnp.bfloat16),
                    preferred_element_type=jnp.float32)
        h32 = jnp.maximum(z + params[f"b{li}"], 0.0)
        h = h32.astype(jnp.bfloat16)
    return h32


if __name__ == "__main__":
    # Gesture-landmark MLP shapes: 21 landmarks * 2 coords = 42 input features.
    input_dims, fc1_dims, fc2_dims, fc3_dims, out_dims = 42, 64, 64, 32, 10

    key = jax.random.PRNGKey(0)
    key, kp = jax.random.split(key)
    params = init_ffnet_params(kp, input_dims, fc1_dims, fc2_dims,
                               fc3_dims, out_dims)
    w_stack, b_stack, out_d = prepare_ffnet_params(params)   # precomputed once

    # --- primary small check (B=8, single grid step) ---
    B = 8
    key, kx = jax.random.split(key)
    x = jax.random.normal(kx, (B, input_dims), dtype=jnp.float32)

    out = ffnet_forward(x, w_stack, b_stack, out_dims=out_d)
    out = jax.block_until_ready(out)
    assert out.shape == (B, out_d)
    assert jnp.allclose(out, ffnet_reference_bf16(x, params), atol=2e-3, rtol=2e-3)
    assert jnp.allclose(out, ffnet_reference_f32(x, params), atol=1e-1, rtol=1e-1)

    # --- batched check exercising grid=2, TM=512, 4x128-row sub-tiling ---
    Bb = 1024
    key, kx2 = jax.random.split(key)
    xb = jax.random.normal(kx2, (Bb, input_dims), dtype=jnp.float32)
    outb = ffnet_forward(xb, w_stack, b_stack, out_dims=out_d)
    outb = jax.block_until_ready(outb)
    assert outb.shape == (Bb, out_d)
    assert jnp.allclose(outb, ffnet_reference_bf16(xb, params), atol=2e-3, rtol=2e-3)
    assert jnp.allclose(outb, ffnet_reference_f32(xb, params), atol=1e-1, rtol=1e-1)

    print("KERNEL_OK")
</pallas_src>

<mosaic_0001>
module attributes {stable_mosaic.version = 11 : i64} {
  func.func @kernel(%arg0: i32, %arg1: memref<8x42xbf16, #tpu.memory_space<vmem>>, %arg2: memref<4x128x128xbf16, #tpu.memory_space<vmem>>, %arg3: memref<4x1x128xf32, #tpu.memory_space<vmem>>, %arg4: memref<8x128xf32, #tpu.memory_space<vmem>>, %arg5: memref<8x128xbf16, #tpu.memory_space<vmem>>, %arg6: memref<8x128xbf16, #tpu.memory_space<vmem>>) attributes {dimension_semantics = [#tpu.dimension_semantics<parallel>], iteration_bounds = array<i64: 1>, scalar_prefetch = 0 : i64, scratch_operands = 2 : i64, tpu.core_type = #tpu.core_type<tc>, window_params = [{transform_indices = @transform_0, window_bounds = array<i64: 8, 42>}, {pipeline_mode = #tpu.pipeline_mode<synchronous>, transform_indices = @transform_1, window_bounds = array<i64: 4, 128, 128>}, {pipeline_mode = #tpu.pipeline_mode<synchronous>, transform_indices = @transform_2, window_bounds = array<i64: 4, 1, 128>}, {transform_indices = @transform_3, window_bounds = array<i64: 8, 128>}]} {
    %cst = arith.constant 0.000000e+00 : bf16
    %0 = vector.broadcast %cst : bf16 to vector<8x128xbf16>
    %c0 = arith.constant 0 : index
    %c0_0 = arith.constant 0 : index
    %1 = vector.load %arg5[%c0, %c0_0] : memref<8x128xbf16, #tpu.memory_space<vmem>>, vector<8x128xbf16>
    tpu.vector_store %arg5[%c0, %c0_0], %0 {strides = array<i32>} : memref<8x128xbf16, #tpu.memory_space<vmem>>, vector<8x128xbf16>,
    %c0_1 = arith.constant 0 : index
    %c0_2 = arith.constant 0 : index
    %2 = vector.load %arg1[%c0_1, %c0_2] : memref<8x42xbf16, #tpu.memory_space<vmem>>, vector<8x42xbf16>
    %c0_3 = arith.constant 0 : index
    %c0_4 = arith.constant 0 : index
    %3 = vector.load %arg5[%c0_3, %c0_4] : memref<8x128xbf16, #tpu.memory_space<vmem>>, vector<8x42xbf16>
    tpu.vector_store %arg5[%c0_3, %c0_4], %2 {strides = array<i32>} : memref<8x128xbf16, #tpu.memory_space<vmem>>, vector<8x42xbf16>,
    %c0_5 = arith.constant 0 : index
    %c0_6 = arith.constant 0 : index
    %c0_7 = arith.constant 0 : index
    %4 = vector.load %arg2[%c0_5, %c0_6, %c0_7] : memref<4x128x128xbf16, #tpu.memory_space<vmem>>, vector<1x128x128xbf16>
    %5 = vector.shape_cast %4 : vector<1x128x128xbf16> to vector<128x128xbf16>
    %c0_8 = arith.constant 0 : index
    %c0_9 = arith.constant 0 : index
    %c0_10 = arith.constant 0 : index
    %6 = vector.load %arg3[%c0_8, %c0_9, %c0_10] : memref<4x1x128xf32, #tpu.memory_space<vmem>>, vector<1x1x128xf32>
    %7 = vector.shape_cast %6 : vector<1x1x128xf32> to vector<1x128xf32>
    %c0_11 = arith.constant 0 : index
    %c0_12 = arith.constant 0 : index
    %8 = vector.load %arg5[%c0_11, %c0_12] : memref<8x128xbf16, #tpu.memory_space<vmem>>, vector<8x128xbf16>
    %cst_13 = arith.constant dense<0.000000e+00> : vector<8x128xf32>
    %9 = tpu.matmul %8, %5, %cst_13 {dimension_numbers = #tpu.dot_dimension_numbers<[1], [0], [0], [1], [0, 0, 1, 1], [], []>} : vector<8x128xbf16>, vector<128x128xbf16>, vector<8x128xf32> -> vector<8x128xf32>
    %10 = vector.broadcast %7 : vector<1x128xf32> to vector<8x128xf32>
    %11 = arith.addf %9, %10 : vector<8x128xf32>
    %cst_14 = arith.constant 0.000000e+00 : f32
    %12 = vector.broadcast %cst_14 : f32 to vector<8x128xf32>
    %13 = arith.maximumf %11, %12 : vector<8x128xf32>
    %14 = arith.truncf %13 : vector<8x128xf32> to vector<8x128xbf16>
    %c0_15 = arith.constant 0 : index
    %c0_16 = arith.constant 0 : index
    %15 = vector.load %arg6[%c0_15, %c0_16] : memref<8x128xbf16, #tpu.memory_space<vmem>>, vector<8x128xbf16>
    tpu.vector_store %arg6[%c0_15, %c0_16], %14 {strides = array<i32>} : memref<8x128xbf16, #tpu.memory_space<vmem>>, vector<8x128xbf16>,
    %c1 = arith.constant 1 : index
    %c0_17 = arith.constant 0 : index
    %c0_18 = arith.constant 0 : index
    %16 = vector.load %arg2[%c1, %c0_17, %c0_18] : memref<4x128x128xbf16, #tpu.memory_space<vmem>>, vector<1x128x128xbf16>
    %17 = vector.shape_cast %16 : vector<1x128x128xbf16> to vector<128x128xbf16>
    %c1_19 = arith.constant 1 : index
    %c0_20 = arith.constant 0 : index
    %c0_21 = arith.constant 0 : index
    %18 = vector.load %arg3[%c1_19, %c0_20, %c0_21] : memref<4x1x128xf32, #tpu.memory_space<vmem>>, vector<1x1x128xf32>
    %19 = vector.shape_cast %18 : vector<1x1x128xf32> to vector<1x128xf32>
    %c0_22 = arith.constant 0 : index
    %c0_23 = arith.constant 0 : index
    %20 = vector.load %arg6[%c0_22, %c0_23] : memref<8x128xbf16, #tpu.memory_space<vmem>>, vector<8x128xbf16>
    %cst_24 = arith.constant dense<0.000000e+00> : vector<8x128xf32>
    %21 = tpu.matmul %20, %17, %cst_24 {dimension_numbers = #tpu.dot_dimension_numbers<[1], [0], [0], [1], [0, 0, 1, 1], [], []>} : vector<8x128xbf16>, vector<128x128xbf16>, vector<8x128xf32> -> vector<8x128xf32>
    %22 = vector.broadcast %19 : vector<1x128xf32> to vector<8x128xf32>
    %23 = arith.addf %21, %22 : vector<8x128xf32>
    %cst_25 = arith.constant 0.000000e+00 : f32
    %24 = vector.broadcast %cst_25 : f32 to vector<8x128xf32>
    %25 = arith.maximumf %23, %24 : vector<8x128xf32>
    %26 = arith.truncf %25 : vector<8x128xf32> to vector<8x128xbf16>
    %c0_26 = arith.constant 0 : index
    %c0_27 = arith.constant 0 : index
    %27 = vector.load %arg5[%c0_26, %c0_27] : memref<8x128xbf16, #tpu.memory_space<vmem>>, vector<8x128xbf16>
    tpu.vector_store %arg5[%c0_26, %c0_27], %26 {strides = array<i32>} : memref<8x128xbf16, #tpu.memory_space<vmem>>, vector<8x128xbf16>,
    %c2 = arith.constant 2 : index
    %c0_28 = arith.constant 0 : index
    %c0_29 = arith.constant 0 : index
    %28 = vector.load %arg2[%c2, %c0_28, %c0_29] : memref<4x128x128xbf16, #tpu.memory_space<vmem>>, vector<1x128x128xbf16>
    %29 = vector.shape_cast %28 : vector<1x128x128xbf16> to vector<128x128xbf16>
    %c2_30 = arith.constant 2 : index
    %c0_31 = arith.constant 0 : index
    %c0_32 = arith.constant 0 : index
    %30 = vector.load %arg3[%c2_30, %c0_31, %c0_32] : memref<4x1x128xf32, #tpu.memory_space<vmem>>, vector<1x1x128xf32>
    %31 = vector.shape_cast %30 : vector<1x1x128xf32> to vector<1x128xf32>
    %c0_33 = arith.constant 0 : index
    %c0_34 = arith.constant 0 : index
    %32 = vector.load %arg5[%c0_33, %c0_34] : memref<8x128xbf16, #tpu.memory_space<vmem>>, vector<8x128xbf16>
    %cst_35 = arith.constant dense<0.000000e+00> : vector<8x128xf32>
    %33 = tpu.matmul %32, %29, %cst_35 {dimension_numbers = #tpu.dot_dimension_numbers<[1], [0], [0], [1], [0, 0, 1, 1], [], []>} : vector<8x128xbf16>, vector<128x128xbf16>, vector<8x128xf32> -> vector<8x128xf32>
    %34 = vector.broadcast %31 : vector<1x128xf32> to vector<8x128xf32>
    %35 = arith.addf %33, %34 : vector<8x128xf32>
    %cst_36 = arith.constant 0.000000e+00 : f32
    %36 = vector.broadcast %cst_36 : f32 to vector<8x128xf32>
    %37 = arith.maximumf %35, %36 : vector<8x128xf32>
    %38 = arith.truncf %37 : vector<8x128xf32> to vector<8x128xbf16>
    %c0_37 = arith.constant 0 : index
    %c0_38 = arith.constant 0 : index
    %39 = vector.load %arg6[%c0_37, %c0_38] : memref<8x128xbf16, #tpu.memory_space<vmem>>, vector<8x128xbf16>
    tpu.vector_store %arg6[%c0_37, %c0_38], %38 {strides = array<i32>} : memref<8x128xbf16, #tpu.memory_space<vmem>>, vector<8x128xbf16>,
    %c3 = arith.constant 3 : index
    %c0_39 = arith.constant 0 : index
    %c0_40 = arith.constant 0 : index
    %40 = vector.load %arg2[%c3, %c0_39, %c0_40] : memref<4x128x128xbf16, #tpu.memory_space<vmem>>, vector<1x128x128xbf16>
    %41 = vector.shape_cast %40 : vector<1x128x128xbf16> to vector<128x128xbf16>
    %c3_41 = arith.constant 3 : index
    %c0_42 = arith.constant 0 : index
    %c0_43 = arith.constant 0 : index
    %42 = vector.load %arg3[%c3_41, %c0_42, %c0_43] : memref<4x1x128xf32, #tpu.memory_space<vmem>>, vector<1x1x128xf32>
    %43 = vector.shape_cast %42 : vector<1x1x128xf32> to vector<1x128xf32>
    %c0_44 = arith.constant 0 : index
    %c0_45 = arith.constant 0 : index
    %44 = vector.load %arg6[%c0_44, %c0_45] : memref<8x128xbf16, #tpu.memory_space<vmem>>, vector<8x128xbf16>
    %cst_46 = arith.constant dense<0.000000e+00> : vector<8x128xf32>
    %45 = tpu.matmul %44, %41, %cst_46 {dimension_numbers = #tpu.dot_dimension_numbers<[1], [0], [0], [1], [0, 0, 1, 1], [], []>} : vector<8x128xbf16>, vector<128x128xbf16>, vector<8x128xf32> -> vector<8x128xf32>
    %46 = vector.broadcast %43 : vector<1x128xf32> to vector<8x128xf32>
    %47 = arith.addf %45, %46 : vector<8x128xf32>
    %cst_47 = arith.constant 0.000000e+00 : f32
    %48 = vector.broadcast %cst_47 : f32 to vector<8x128xf32>
    %49 = arith.maximumf %47, %48 : vector<8x128xf32>
    %c0_48 = arith.constant 0 : index
    %c0_49 = arith.constant 0 : index
    %50 = vector.load %arg4[%c0_48, %c0_49] : memref<8x128xf32, #tpu.memory_space<vmem>>, vector<8x128xf32>
    tpu.vector_store %arg4[%c0_48, %c0_49], %49 {strides = array<i32>} : memref<8x128xf32, #tpu.memory_space<vmem>>, vector<8x128xf32>,
    return
  }
  func.func @transform_0(%arg0: i32) -> (i32, i32) {
    %c0_i32 = arith.constant 0 : i32
    %c0_i32_0 = arith.constant 0 : i32
    return %arg0, %c0_i32 : i32, i32
  }
  func.func @transform_1(%arg0: i32) -> (i32, i32, i32) {
    %c0_i32 = arith.constant 0 : i32
    %c0_i32_0 = arith.constant 0 : i32
    %c0_i32_1 = arith.constant 0 : i32
    %c0_i32_2 = arith.constant 0 : i32
    return %c0_i32, %c0_i32_0, %c0_i32_1 : i32, i32, i32
  }
  func.func @transform_2(%arg0: i32) -> (i32, i32, i32) {
    %c0_i32 = arith.constant 0 : i32
    %c0_i32_0 = arith.constant 0 : i32
    %c0_i32_1 = arith.constant 0 : i32
    %c0_i32_2 = arith.constant 0 : i32
    return %c0_i32, %c0_i32_0, %c0_i32_1 : i32, i32, i32
  }
  func.func @transform_3(%arg0: i32) -> (i32, i32) {
    %c0_i32 = arith.constant 0 : i32
    %c0_i32_0 = arith.constant 0 : i32
    return %arg0, %c0_i32 : i32, i32
  }
}

</mosaic_0001>

<llo_original>
// kernel: ffnet_forward.1
$region0: #{ffnet_forward.1}
  #allocation0 [shape = 'u32[]', space=smem, size = 0x4, offset = 0x4, fixed_abs, tag = 'smem constant byte address 0x4 - core index']
  #allocation1 [shape = 'u32[144,128]{1,0:T(1,128)}', space=vmem, size = 0x12000, scoped, tag = 'internal scratch']
  #allocation2 [shape = 'bf16[8,128]{1,0:T(8,128)(2,1)}', space=vmem, size = 0x800, scoped, tag = 'scratch operand']
  #allocation3 [shape = 'bf16[8,128]{1,0:T(8,128)(2,1)}', space=vmem, size = 0x800, scoped, tag = 'scratch operand']
  %s0 = inlined_call_operand.vmem [shape: bf16[8,42], index: 0, kind: input, shape index: {}]
  %s1 = inlined_call_operand.hbm [shape: bf16[4,128,128], index: 1, kind: input, shape index: {}]
  %s2 = inlined_call_operand.vmem [shape: f32[4,1,128], index: 2, kind: input, shape index: {}]
  %s3 = inlined_call_operand.hbm [shape: f32[8,128], index: 3, kind: output, shape index: {}]
  %s4 = sld [smem:[#allocation0]]
  $region26: #{ffnet_forward.1} parent=0
    _
  %s6 = ssub.s32 1, %s4
  %s7 = scalar_select 0, %s6, %s4
  $region1: #{ffnet_forward.1} parent=0
    #allocation4 [shape = 'u8[131072]{0}', space=vmem, size = 0x20000, scoped, tag = 'input window, operand 1, single buffered']
    #allocation5 [shape = 's32[1]{0}', space=sflag, size = 0x4, scoped, tag = 'scoped memory for ffnet_forward.1']
    #allocation6 [shape = 's32[1]{0}', space=sflag, size = 0x4, scoped, tag = 'scoped memory for ffnet_forward.1']
    #allocation7 [shape = 'u8[4096]{0}', space=vmem, size = 0x1000, scoped, tag = 'output window, operand 0, single buffered']
    %8 = vsyncpa [#allocation5], 0
    %9 = vsyncpa [#allocation6], 0
    // Predicated region
    $region2: #{ffnet_forward.1} parent=1 // pred_check
      _
    $region3: #{ffnet_forward.1} parent=1 // pred_check_branch
      %11 = sbr.rel (0) target = $region5
    $region4: #{ffnet_forward.1} parent=1 // pred_region
      _
    $region5: #{ffnet_forward.1} parent=1 // pred_fallthru
      _
    // Predicated region
    $region6: #{ffnet_forward.1} parent=1 // pred_check
      _
    $region7: #{ffnet_forward.1} parent=1 // pred_check_branch
      %13 = sbr.rel (0) target = $region9
    $region8: #{ffnet_forward.1} parent=1 // pred_region
      %s15 = ssub.s32 4096, 4096
      %16 = vsyncadd [#allocation5], %s15
      %s17 = sshll.u32 [#allocation4], 4
      %s18 = int_to_ptr.vmem [resolvable:$true] %s17
      %23 = dma.hbm_to_vmem [thread:$0]  %s1, 4096, %s18, [#allocation5], 64, 64, 4
    $region9: #{ffnet_forward.1} parent=1 // pred_fallthru
      _
    // Predicated region
    $region10: #{ffnet_forward.1} parent=1 // pred_check
      _
    $region11: #{ffnet_forward.1} parent=1 // pred_check_branch
      %25 = sbr.rel (0) target = $region13
    $region12: #{ffnet_forward.1} parent=1 // pred_region
      _
    $region13: #{ffnet_forward.1} parent=1 // pred_fallthru
      _
    // Predicated region
    $region14: #{ffnet_forward.1} parent=1 // pred_check
      _
    $region15: #{ffnet_forward.1} parent=1 // pred_check_branch
      %27 = sbr.rel (0) target = $region17
    $region16: #{ffnet_forward.1} parent=1 // pred_region
      %28 = dma.done [#allocation5], 4096
    $region17: #{ffnet_forward.1} parent=1 // pred_fallthru
      _
    %30 = vst [vmem:[#allocation2] sm:$0xf] 0
    %v31 = vld [vmem:[%s0] sm:$0xf]
    %vm32 = vcmask 338944
    %33 = vst.msk [vmem:[#allocation2] sm:$0xf] %vm32, %v31
    %v34 = vld [vmem:[#allocation4] sm:$0xf]
    %v35 = vld [vmem:[#allocation4 + $0x4] sm:$0xf]
    %v36 = vld [vmem:[#allocation4 + $0x8] sm:$0xf]
    %v37 = vld [vmem:[#allocation4 + $0xc] sm:$0xf]
    %v38 = vld [vmem:[#allocation4 + $0x10] sm:$0xf]
    %v39 = vld [vmem:[#allocation4 + $0x14] sm:$0xf]
    %v40 = vld [vmem:[#allocation4 + $0x18] sm:$0xf]
    %v41 = vld [vmem:[#allocation4 + $0x1c] sm:$0xf]
    %v42 = vld [vmem:[#allocation4 + $0x20] sm:$0xf]
    %v43 = vld [vmem:[#allocation4 + $0x24] sm:$0xf]
    %v44 = vld [vmem:[#allocation4 + $0x28] sm:$0xf]
    %v45 = vld [vmem:[#allocation4 + $0x2c] sm:$0xf]
    %v46 = vld [vmem:[#allocation4 + $0x30] sm:$0xf]
    %v47 = vld [vmem:[#allocation4 + $0x34] sm:$0xf]
    %v48 = vld [vmem:[#allocation4 + $0x38] sm:$0xf]
    %v49 = vld [vmem:[#allocation4 + $0x3c] sm:$0xf]
    %v50 = vld [vmem:[%s2] sm:$0x1]
    %v51 = vld [vmem:[#allocation2] sm:$0xf]
    %v53 = vlaneseq
    %v54 = vshrl.u32 %v53, 7
    %v55 = vsub.s32 0, %v54
    %v56 = vrot.slane %v50, %v55
    %v74 = vunpack.c.l.b16 %v34
    %v75 = vunpack.c.l.b16 %v35
    %v76 = vunpack.c.l.b16 %v36
    %v77 = vunpack.c.l.b16 %v37
    %v78 = vunpack.c.l.b16 %v38
    %v79 = vunpack.c.l.b16 %v39
    %v80 = vunpack.c.l.b16 %v40
    %v81 = vunpack.c.l.b16 %v41
    %v82 = vunpack.c.l.b16 %v42
    %v83 = vunpack.c.l.b16 %v43
    %v84 = vunpack.c.l.b16 %v44
    %v85 = vunpack.c.l.b16 %v45
    %v86 = vunpack.c.l.b16 %v46
    %v87 = vunpack.c.l.b16 %v47
    %v88 = vunpack.c.l.b16 %v48
    %v89 = vunpack.c.l.b16 %v49
    %v90 = vpack.c.b16 %v75, %v74
    %v91 = vpack.c.b16 %v77, %v76
    %v92 = vpack.c.b16 %v79, %v78
    %v93 = vpack.c.b16 %v81, %v80
    %v94 = vpack.c.b16 %v83, %v82
    %v95 = vpack.c.b16 %v85, %v84
    %v96 = vpack.c.b16 %v87, %v86
    %v97 = vpack.c.b16 %v89, %v88
    %106 = vmatprep.subr.bf16.mxu0 0
    %107 = vmatpush1.bf16.msra.mxu0 %v90
    %108 = vmatprep.subr.bf16.mxu0 0
    %109 = vmatpush1.bf16.msra.mxu0 %v91
    %110 = vmatprep.subr.bf16.mxu0 0
    %111 = vmatpush1.bf16.msra.mxu0 %v92
    %112 = vmatprep.subr.bf16.mxu0 0
    %113 = vmatpush1.bf16.msra.mxu0 %v93
    %114 = vmatprep.subr.bf16.mxu0 0
    %115 = vmatpush1.bf16.msra.mxu0 %v94
    %116 = vmatprep.subr.bf16.mxu0 0
    %117 = vmatpush1.bf16.msra.mxu0 %v95
    %118 = vmatprep.subr.bf16.mxu0 0
    %119 = vmatpush1.bf16.msra.mxu0 %v96
    %120 = vmatprep.subr.bf16.mxu0 0
    %121 = vmatpush1.bf16.msra.mxu0 %v97
    %122 = vmatprep.subr.bf16.mxu0 0
    %123 = vmatpush1.bf16.msra.mxu0 0
    %124 = vmatprep.subr.bf16.mxu0 0
    %125 = vmatpush1.bf16.msra.mxu0 0
    %126 = vmatprep.subr.bf16.mxu0 0
    %127 = vmatpush1.bf16.msra.mxu0 0
    %128 = vmatprep.subr.bf16.mxu0 0
    %129 = vmatpush1.bf16.msra.mxu0 0
    %130 = vmatprep.subr.bf16.mxu0 0
    %131 = vmatpush1.bf16.msra.mxu0 0
    %132 = vmatprep.subr.bf16.mxu0 0
    %133 = vmatpush1.bf16.msra.mxu0 0
    %134 = vmatprep.subr.bf16.mxu0 0
    %135 = vmatpush1.bf16.msra.mxu0 0
    %136 = vmatprep.subr.bf16.mxu0 0
    %137 = vmatpush1.bf16.msra.mxu0 0
    %138 = vmatprep.mubr.bf16.mxu0 0
    %139 = vmatmul.mubr.bf16.gmra.mrb[0].mxu0 %v51
    %v140 = vpop.f32.mrb[0].mxu0
    %v141 = vadd.f32 %v56, %v140
    %v142 = vpop.f32.mrb[0].mxu0
    %v143 = vpop.f32.mrb[0].mxu0
    %v144 = vpop.f32.mrb[0].mxu0
    %145 = vdwg.mxu0
    %v146 = vmax.f32 %v141, 0.0
    %v147 = vpack.c.bf16 %v146, %v146
    %148 = vst [vmem:[#allocation3] sm:$0xf] %v147
    %s149 = scalar_lea.vmem [#allocation4], 64
    %v150 = vld [vmem:[%s149] sm:$0xf]
    %v151 = vld [vmem:[%s149 + $0x4] sm:$0xf]
    %v152 = vld [vmem:[%s149 + $0x8] sm:$0xf]
    %v153 = vld [vmem:[%s149 + $0xc] sm:$0xf]
    %v154 = vld [vmem:[%s149 + $0x10] sm:$0xf]
    %v155 = vld [vmem:[%s149 + $0x14] sm:$0xf]
    %v156 = vld [vmem:[%s149 + $0x18] sm:$0xf]
    %v157 = vld [vmem:[%s149 + $0x1c] sm:$0xf]
    %v158 = vld [vmem:[%s149 + $0x20] sm:$0xf]
    %v159 = vld [vmem:[%s149 + $0x24] sm:$0xf]
    %v160 = vld [vmem:[%s149 + $0x28] sm:$0xf]
    %v161 = vld [vmem:[%s149 + $0x2c] sm:$0xf]
    %v162 = vld [vmem:[%s149 + $0x30] sm:$0xf]
    %v163 = vld [vmem:[%s149 + $0x34] sm:$0xf]
    %v164 = vld [vmem:[%s149 + $0x38] sm:$0xf]
    %v165 = vld [vmem:[%s149 + $0x3c] sm:$0xf]
    %s166 = scalar_lea.vmem %s2, 1
    %v167 = vld [vmem:[%s166] sm:$0x1]
    %v168 = vld [vmem:[#allocation3] sm:$0xf]
    %v170 = vlaneseq
    %v171 = vshrl.u32 %v170, 7
    %v172 = vsub.s32 0, %v171
    %v173 = vrot.slane %v167, %v172
    %v191 = vunpack.c.l.b16 %v150
    %v192 = vunpack.c.l.b16 %v151
    %v193 = vunpack.c.l.b16 %v152
    %v194 = vunpack.c.l.b16 %v153
    %v195 = vunpack.c.l.b16 %v154
    %v196 = vunpack.c.l.b16 %v155
    %v197 = vunpack.c.l.b16 %v156
    %v198 = vunpack.c.l.b16 %v157
    %v199 = vunpack.c.l.b16 %v158
    %v200 = vunpack.c.l.b16 %v159
    %v201 = vunpack.c.l.b16 %v160
    %v202 = vunpack.c.l.b16 %v161
    %v203 = vunpack.c.l.b16 %v162
    %v204 = vunpack.c.l.b16 %v163
    %v205 = vunpack.c.l.b16 %v164
    %v206 = vunpack.c.l.b16 %v165
    %v207 = vpack.c.b16 %v192, %v191
    %v208 = vpack.c.b16 %v194, %v193
    %v209 = vpack.c.b16 %v196, %v195
    %v210 = vpack.c.b16 %v198, %v197
    %v211 = vpack.c.b16 %v200, %v199
    %v212 = vpack.c.b16 %v202, %v201
    %v213 = vpack.c.b16 %v204, %v203
    %v214 = vpack.c.b16 %v206, %v205
    %223 = vmatprep.subr.bf16.mxu0 0
    %224 = vmatpush1.bf16.msra.mxu0 %v207
    %225 = vmatprep.subr.bf16.mxu0 0
    %226 = vmatpush1.bf16.msra.mxu0 %v208
    %227 = vmatprep.subr.bf16.mxu0 0
    %228 = vmatpush1.bf16.msra.mxu0 %v209
    %229 = vmatprep.subr.bf16.mxu0 0
    %230 = vmatpush1.bf16.msra.mxu0 %v210
    %231 = vmatprep.subr.bf16.mxu0 0
    %232 = vmatpush1.bf16.msra.mxu0 %v211
    %233 = vmatprep.subr.bf16.mxu0 0
    %234 = vmatpush1.bf16.msra.mxu0 %v212
    %235 = vmatprep.subr.bf16.mxu0 0
    %236 = vmatpush1.bf16.msra.mxu0 %v213
    %237 = vmatprep.subr.bf16.mxu0 0
    %238 = vmatpush1.bf16.msra.mxu0 %v214
    %239 = vmatprep.subr.bf16.mxu0 0
    %240 = vmatpush1.bf16.msra.mxu0 0
    %241 = vmatprep.subr.bf16.mxu0 0
    %242 = vmatpush1.bf16.msra.mxu0 0
    %243 = vmatprep.subr.bf16.mxu0 0
    %244 = vmatpush1.bf16.msra.mxu0 0
    %245 = vmatprep.subr.bf16.mxu0 0
    %246 = vmatpush1.bf16.msra.mxu0 0
    %247 = vmatprep.subr.bf16.mxu0 0
    %248 = vmatpush1.bf16.msra.mxu0 0
    %249 = vmatprep.subr.bf16.mxu0 0
    %250 = vmatpush1.bf16.msra.mxu0 0
    %251 = vmatprep.subr.bf16.mxu0 0
    %252 = vmatpush1.bf16.msra.mxu0 0
    %253 = vmatprep.subr.bf16.mxu0 0
    %254 = vmatpush1.bf16.msra.mxu0 0
    %255 = vmatprep.mubr.bf16.mxu0 0
    %256 = vmatmul.mubr.bf16.gmra.mrb[0].mxu0 %v168
    %v257 = vpop.f32.mrb[0].mxu0
    %v258 = vadd.f32 %v173, %v257
    %v259 = vpop.f32.mrb[0].mxu0
    %v260 = vpop.f32.mrb[0].mxu0
    %v261 = vpop.f32.mrb[0].mxu0
    %262 = vdwg.mxu0
    %v263 = vmax.f32 %v258, 0.0
    %v264 = vpack.c.bf16 %v263, %v263
    %265 = vst [vmem:[#allocation2] sm:$0xf] %v264
    %s266 = scalar_lea.vmem [#allocation4], 128
    %v267 = vld [vmem:[%s266] sm:$0xf]
    %v268 = vld [vmem:[%s266 + $0x4] sm:$0xf]
    %v269 = vld [vmem:[%s266 + $0x8] sm:$0xf]
    %v270 = vld [vmem:[%s266 + $0xc] sm:$0xf]
    %v271 = vld [vmem:[%s266 + $0x10] sm:$0xf]
    %v272 = vld [vmem:[%s266 + $0x14] sm:$0xf]
    %v273 = vld [vmem:[%s266 + $0x18] sm:$0xf]
    %v274 = vld [vmem:[%s266 + $0x1c] sm:$0xf]
    %v275 = vld [vmem:[%s266 + $0x20] sm:$0xf]
    %v276 = vld [vmem:[%s266 + $0x24] sm:$0xf]
    %v277 = vld [vmem:[%s266 + $0x28] sm:$0xf]
    %v278 = vld [vmem:[%s266 + $0x2c] sm:$0xf]
    %v279 = vld [vmem:[%s266 + $0x30] sm:$0xf]
    %v280 = vld [vmem:[%s266 + $0x34] sm:$0xf]
    %v281 = vld [vmem:[%s266 + $0x38] sm:$0xf]
    %v282 = vld [vmem:[%s266 + $0x3c] sm:$0xf]
    %s283 = scalar_lea.vmem %s2, 2
    %v284 = vld [vmem:[%s283] sm:$0x1]
    %v285 = vld [vmem:[#allocation2] sm:$0xf]
    %v287 = vlaneseq
    %v288 = vshrl.u32 %v287, 7
    %v289 = vsub.s32 0, %v288
    %v290 = vrot.slane %v284, %v289
    %v308 = vunpack.c.l.b16 %v267
    %v309 = vunpack.c.l.b16 %v268
    %v310 = vunpack.c.l.b16 %v269
    %v311 = vunpack.c.l.b16 %v270
    %v312 = vunpack.c.l.b16 %v271
    %v313 = vunpack.c.l.b16 %v272
    %v314 = vunpack.c.l.b16 %v273
    %v315 = vunpack.c.l.b16 %v274
    %v316 = vunpack.c.l.b16 %v275
    %v317 = vunpack.c.l.b16 %v276
    %v318 = vunpack.c.l.b16 %v277
    %v319 = vunpack.c.l.b16 %v278
    %v320 = vunpack.c.l.b16 %v279
    %v321 = vunpack.c.l.b16 %v280
    %v322 = vunpack.c.l.b16 %v281
    %v323 = vunpack.c.l.b16 %v282
    %v324 = vpack.c.b16 %v309, %v308
    %v325 = vpack.c.b16 %v311, %v310
    %v326 = vpack.c.b16 %v313, %v312
    %v327 = vpack.c.b16 %v315, %v314
    %v328 = vpack.c.b16 %v317, %v316
    %v329 = vpack.c.b16 %v319, %v318
    %v330 = vpack.c.b16 %v321, %v320
    %v331 = vpack.c.b16 %v323, %v322
    %340 = vmatprep.subr.bf16.mxu0 0
    %341 = vmatpush1.bf16.msra.mxu0 %v324
    %342 = vmatprep.subr.bf16.mxu0 0
    %343 = vmatpush1.bf16.msra.mxu0 %v325
    %344 = vmatprep.subr.bf16.mxu0 0
    %345 = vmatpush1.bf16.msra.mxu0 %v326
    %346 = vmatprep.subr.bf16.mxu0 0
    %347 = vmatpush1.bf16.msra.mxu0 %v327
    %348 = vmatprep.subr.bf16.mxu0 0
    %349 = vmatpush1.bf16.msra.mxu0 %v328
    %350 = vmatprep.subr.bf16.mxu0 0
    %351 = vmatpush1.bf16.msra.mxu0 %v329
    %352 = vmatprep.subr.bf16.mxu0 0
    %353 = vmatpush1.bf16.msra.mxu0 %v330
    %354 = vmatprep.subr.bf16.mxu0 0
    %355 = vmatpush1.bf16.msra.mxu0 %v331
    %356 = vmatprep.subr.bf16.mxu0 0
    %357 = vmatpush1.bf16.msra.mxu0 0
    %358 = vmatprep.subr.bf16.mxu0 0
    %359 = vmatpush1.bf16.msra.mxu0 0
    %360 = vmatprep.subr.bf16.mxu0 0
    %361 = vmatpush1.bf16.msra.mxu0 0
    %362 = vmatprep.subr.bf16.mxu0 0
    %363 = vmatpush1.bf16.msra.mxu0 0
    %364 = vmatprep.subr.bf16.mxu0 0
    %365 = vmatpush1.bf16.msra.mxu0 0
    %366 = vmatprep.subr.bf16.mxu0 0
    %367 = vmatpush1.bf16.msra.mxu0 0
    %368 = vmatprep.subr.bf16.mxu0 0
    %369 = vmatpush1.bf16.msra.mxu0 0
    %370 = vmatprep.subr.bf16.mxu0 0
    %371 = vmatpush1.bf16.msra.mxu0 0
    %372 = vmatprep.mubr.bf16.mxu0 0
    %373 = vmatmul.mubr.bf16.gmra.mrb[0].mxu0 %v285
    %v374 = vpop.f32.mrb[0].mxu0
    %v375 = vadd.f32 %v290, %v374
    %v376 = vpop.f32.mrb[0].mxu0
    %v377 = vpop.f32.mrb[0].mxu0
    %v378 = vpop.f32.mrb[0].mxu0
    %379 = vdwg.mxu0
    %v380 = vmax.f32 %v375, 0.0
    %v381 = vpack.c.bf16 %v380, %v380
    %382 = vst [vmem:[#allocation3] sm:$0xf] %v381
    %s383 = scalar_lea.vmem [#allocation4], 192
    %v384 = vld [vmem:[%s383] sm:$0xf]
    %v385 = vld [vmem:[%s383 + $0x4] sm:$0xf]
    %v386 = vld [vmem:[%s383 + $0x8] sm:$0xf]
    %v387 = vld [vmem:[%s383 + $0xc] sm:$0xf]
    %v388 = vld [vmem:[%s383 + $0x10] sm:$0xf]
    %v389 = vld [vmem:[%s383 + $0x14] sm:$0xf]
    %v390 = vld [vmem:[%s383 + $0x18] sm:$0xf]
    %v391 = vld [vmem:[%s383 + $0x1c] sm:$0xf]
    %v392 = vld [vmem:[%s383 + $0x20] sm:$0xf]
    %v393 = vld [vmem:[%s383 + $0x24] sm:$0xf]
    %v394 = vld [vmem:[%s383 + $0x28] sm:$0xf]
    %v395 = vld [vmem:[%s383 + $0x2c] sm:$0xf]
    %v396 = vld [vmem:[%s383 + $0x30] sm:$0xf]
    %v397 = vld [vmem:[%s383 + $0x34] sm:$0xf]
    %v398 = vld [vmem:[%s383 + $0x38] sm:$0xf]
    %v399 = vld [vmem:[%s383 + $0x3c] sm:$0xf]
    %s400 = scalar_lea.vmem %s2, 3
    %v401 = vld [vmem:[%s400] sm:$0x1]
    %v402 = vld [vmem:[#allocation3] sm:$0xf]
    %v404 = vlaneseq
    %v405 = vshrl.u32 %v404, 7
    %v406 = vsub.s32 0, %v405
    %v407 = vrot.slane %v401, %v406
    %v425 = vunpack.c.l.b16 %v384
    %v426 = vunpack.c.l.b16 %v385
    %v427 = vunpack.c.l.b16 %v386
    %v428 = vunpack.c.l.b16 %v387
    %v429 = vunpack.c.l.b16 %v388
    %v430 = vunpack.c.l.b16 %v389
    %v431 = vunpack.c.l.b16 %v390
    %v432 = vunpack.c.l.b16 %v391
    %v433 = vunpack.c.l.b16 %v392
    %v434 = vunpack.c.l.b16 %v393
    %v435 = vunpack.c.l.b16 %v394
    %v436 = vunpack.c.l.b16 %v395
    %v437 = vunpack.c.l.b16 %v396
    %v438 = vunpack.c.l.b16 %v397
    %v439 = vunpack.c.l.b16 %v398
    %v440 = vunpack.c.l.b16 %v399
    %v441 = vpack.c.b16 %v426, %v425
    %v442 = vpack.c.b16 %v428, %v427
    %v443 = vpack.c.b16 %v430, %v429
    %v444 = vpack.c.b16 %v432, %v431
    %v445 = vpack.c.b16 %v434, %v433
    %v446 = vpack.c.b16 %v436, %v435
    %v447 = vpack.c.b16 %v438, %v437
    %v448 = vpack.c.b16 %v440, %v439
    %457 = vmatprep.subr.bf16.mxu0 0
    %458 = vmatpush1.bf16.msra.mxu0 %v441
    %459 = vmatprep.subr.bf16.mxu0 0
    %460 = vmatpush1.bf16.msra.mxu0 %v442
    %461 = vmatprep.subr.bf16.mxu0 0
    %462 = vmatpush1.bf16.msra.mxu0 %v443
    %463 = vmatprep.subr.bf16.mxu0 0
    %464 = vmatpush1.bf16.msra.mxu0 %v444
    %465 = vmatprep.subr.bf16.mxu0 0
    %466 = vmatpush1.bf16.msra.mxu0 %v445
    %467 = vmatprep.subr.bf16.mxu0 0
    %468 = vmatpush1.bf16.msra.mxu0 %v446
    %469 = vmatprep.subr.bf16.mxu0 0
    %470 = vmatpush1.bf16.msra.mxu0 %v447
    %471 = vmatprep.subr.bf16.mxu0 0
    %472 = vmatpush1.bf16.msra.mxu0 %v448
    %473 = vmatprep.subr.bf16.mxu0 0
    %474 = vmatpush1.bf16.msra.mxu0 0
    %475 = vmatprep.subr.bf16.mxu0 0
    %476 = vmatpush1.bf16.msra.mxu0 0
    %477 = vmatprep.subr.bf16.mxu0 0
    %478 = vmatpush1.bf16.msra.mxu0 0
    %479 = vmatprep.subr.bf16.mxu0 0
    %480 = vmatpush1.bf16.msra.mxu0 0
    %481 = vmatprep.subr.bf16.mxu0 0
    %482 = vmatpush1.bf16.msra.mxu0 0
    %483 = vmatprep.subr.bf16.mxu0 0
    %484 = vmatpush1.bf16.msra.mxu0 0
    %485 = vmatprep.subr.bf16.mxu0 0
    %486 = vmatpush1.bf16.msra.mxu0 0
    %487 = vmatprep.subr.bf16.mxu0 0
    %488 = vmatpush1.bf16.msra.mxu0 0
    %489 = vmatprep.mubr.bf16.mxu0 0
    %490 = vmatmul.mubr.bf16.gmra.mrb[0].mxu0 %v402
    %v491 = vpop.f32.mrb[0].mxu0
    %v492 = vadd.f32 %v407, %v491
    %v493 = vpop.f32.mrb[0].mxu0
    %v494 = vpop.f32.mrb[0].mxu0
    %v495 = vpop.f32.mrb[0].mxu0
    %496 = vdwg.mxu0
    %v497 = vmax.f32 %v492, 0.0
    %498 = vst [vmem:[#allocation7] sm:$0xff] %v497
    // Predicated region
    $region18: #{ffnet_forward.1} parent=1 // pred_check
      _
    $region19: #{ffnet_forward.1} parent=1 // pred_check_branch
      %500 = sbr.rel (0) target = $region21
    $region20: #{ffnet_forward.1} parent=1 // pred_region
      %s502 = ssub.s32 128, 128
      %503 = vsyncadd [#allocation6], %s502
      %s505 = sshll.u32 [#allocation7], 4
      %s506 = int_to_ptr.vmem [resolvable:$true] %s505
      %508 = dma.vmem_to_hbm [thread:$0]  %s506, 128, %s3, [#allocation6]
    $region21: #{ffnet_forward.1} parent=1 // pred_fallthru
      _
    // Predicated region
    $region22: #{ffnet_forward.1} parent=1 // pred_check
      _
    $region23: #{ffnet_forward.1} parent=1 // pred_check_branch
      %510 = sbr.rel (0) target = $region25
    $region24: #{ffnet_forward.1} parent=1 // pred_region
      %511 = dma.done [#allocation6], 128
    $region25: #{ffnet_forward.1} parent=1 // pred_fallthru
      _
    %512 = vsyncpa [#allocation5], 1
    %513 = vsyncpa [#allocation6], 1

</llo_original>
